<compile_context>
chip_gen: v7x
topology: tpu7x:2x2x1
jax: 0.10.0
libtpu: 0.0.40
codegen_flags: <defaults>
</compile_context>

<pallas_src>
import jax
import jax.numpy as jnp
from jax.experimental import pallas as pl
from jax.experimental.pallas import tpu as pltpu

_LANE = 128       # lane width: output features padded to a multiple of this
_SUBLANE = 8      # sublane width: batch tile rounded to a multiple of this


def _make_mlp_kernel(num_layers):
    """Fused MLP kernel: all matmuls + bias adds + tanh in one body."""

    def kernel(*refs):
        x_ref = refs[0]
        o_ref = refs[-1]
        param_refs = refs[1:-1]  # interleaved: w0, b0, w1, b1, ...

        h = x_ref[...]
        for i in range(num_layers):
            w = param_refs[2 * i][...]
            b = param_refs[2 * i + 1][...].astype(jnp.float32)
            # MXU matmul in the operands' native dtype (bf16-capable) with
            # f32 accumulation; bias broadcast-add once per layer (VPU, f32).
            h = jnp.dot(h.astype(w.dtype), w,
                        preferred_element_type=jnp.float32) + b
            if i < num_layers - 1:
                h = jnp.tanh(h)  # EUP transcendental, kept in f32
        o_ref[...] = h.astype(o_ref.dtype)

    return kernel


def mlp_forward(x, weights, biases, *, tile_m=None):
    """Run the CustomTorchMLPMod forward pass with a single pallas_call.

    x:        [B, D_in]
    weights:  list of [D_in_i, D_out_i] (already transposed, torch-style .T)
    biases:   list of [1, D_out_i]
    """
    assert len(weights) == len(biases)
    num_layers = len(weights)
    B, d_in = x.shape
    out_dim = weights[-1].shape[1]

    weights = list(weights)
    biases = list(biases)

    # --- Lane-dense output: pad last layer's output features to 128*k -------
    padded_out = pl.cdiv(out_dim, _LANE) * _LANE
    if padded_out != out_dim:
        pad_n = padded_out - out_dim
        weights[-1] = jnp.pad(weights[-1], ((0, 0), (0, pad_n)))
        biases[-1] = jnp.pad(biases[-1], ((0, 0), (0, pad_n)))

    # --- Batch tiling: one big tile for small B, 256-row tiles otherwise ----
    if tile_m is None:
        tile_m = B if B <= 512 else 256
    tile_m = max(_SUBLANE, pl.cdiv(tile_m, _SUBLANE) * _SUBLANE)
    padded_B = pl.cdiv(B, tile_m) * tile_m
    if padded_B != B:
        x = jnp.pad(x, ((0, padded_B - B), (0, 0)))
    grid = (padded_B // tile_m,)

    # Batch is tiled across the grid; all (small) weights/biases are resident
    # in VMEM as full blocks for every grid step. At these sizes the running
    # activation tile fits comfortably in vregs, so no explicit VMEM scratch
    # is allocated for it.
    in_specs = [pl.BlockSpec((tile_m, d_in), lambda i: (i, 0))]
    args = [x]
    for w, b in zip(weights, biases):
        in_specs.append(pl.BlockSpec(w.shape, lambda i: (0, 0)))
        in_specs.append(pl.BlockSpec(b.shape, lambda i: (0, 0)))
        args.append(w)
        args.append(b)

    out_spec = pl.BlockSpec((tile_m, padded_out), lambda i: (i, 0))

    # --- Cost estimate so XLA schedules around the custom call --------------
    flops = 2 * padded_B * sum(w.shape[0] * w.shape[1] for w in weights)
    transcendentals = padded_B * sum(w.shape[1] for w in weights[:-1])
    bytes_accessed = (
        x.size * x.dtype.itemsize
        + sum(w.size * w.dtype.itemsize for w in weights)
        + sum(b.size * b.dtype.itemsize for b in biases)
        + padded_B * padded_out * x.dtype.itemsize
    )

    fn = pl.pallas_call(
        _make_mlp_kernel(num_layers),
        out_shape=jax.ShapeDtypeStruct((padded_B, padded_out), x.dtype),
        grid=grid,
        in_specs=in_specs,
        out_specs=out_spec,
        compiler_params=pltpu.CompilerParams(
            dimension_semantics=("parallel",)
        ),
        cost_estimate=pl.CostEstimate(
            flops=flops,
            transcendentals=transcendentals,
            bytes_accessed=bytes_accessed,
        ),
    )
    out = fn(*args)
    # Slice off the batch / output-feature padding.
    return out[:B, :out_dim]


def _reference_mlp(x, weights, biases):
    """Pure-JAX reference mirroring the PyTorch forward exactly."""
    tmp = x
    n = len(weights)
    for i in range(n - 1):
        tmp = jnp.tanh(jnp.matmul(tmp, weights[i]) + biases[i])
    tmp = jnp.matmul(tmp, weights[n - 1]) + biases[n - 1]
    return tmp


if __name__ == "__main__":
    # Network config implied by the module: a list of activations, one per
    # layer; depth = len(activations). Use depth=3: [in -> h -> h -> out].
    batch = 16
    d_in = 32
    d_hidden = 64
    d_out = 16
    layer_dims = [(d_in, d_hidden), (d_hidden, d_hidden), (d_hidden, d_out)]

    key = jax.random.PRNGKey(0)
    keys = jax.random.split(key, 2 * len(layer_dims) + 1)

    # Deterministic "state_dict": Linear weights are [out, in] in torch; the
    # module transposes them, so we directly build the transposed [in, out]
    # weights and [1, out] biases here.
    weights = []
    biases = []
    for li, (din, dout) in enumerate(layer_dims):
        w = (jax.random.normal(keys[2 * li], (din, dout), jnp.float32)
             / jnp.sqrt(jnp.float32(din)))
        b = 0.1 * jax.random.normal(keys[2 * li + 1], (1, dout), jnp.float32)
        weights.append(w)
        biases.append(b)

    x = jax.random.normal(keys[-1], (batch, d_in), jnp.float32)

    out = mlp_forward(x, weights, biases)
    out = jax.block_until_ready(out)

    ref = _reference_mlp(x, weights, biases)
    assert out.shape == (batch, d_out)
    assert jnp.allclose(out, ref, atol=1e-5, rtol=1e-5), "mismatch vs reference"

    print("KERNEL_OK")
</pallas_src>

<mosaic_0001>
module attributes {stable_mosaic.version = 11 : i64} {
  func.func @kernel(%arg0: i32, %arg1: memref<16x32xf32, #tpu.memory_space<vmem>>, %arg2: memref<32x64xf32, #tpu.memory_space<vmem>>, %arg3: memref<1x64xf32, #tpu.memory_space<vmem>>, %arg4: memref<64x64xf32, #tpu.memory_space<vmem>>, %arg5: memref<1x64xf32, #tpu.memory_space<vmem>>, %arg6: memref<64x128xf32, #tpu.memory_space<vmem>>, %arg7: memref<1x128xf32, #tpu.memory_space<vmem>>, %arg8: memref<16x128xf32, #tpu.memory_space<vmem>>) attributes {dimension_semantics = [#tpu.dimension_semantics<parallel>], iteration_bounds = array<i64: 1>, scalar_prefetch = 0 : i64, scratch_operands = 0 : i64, tpu.core_type = #tpu.core_type<tc>, window_params = [{transform_indices = @transform_0, window_bounds = array<i64: 16, 32>}, {pipeline_mode = #tpu.pipeline_mode<synchronous>, transform_indices = @transform_1, window_bounds = array<i64: 32, 64>}, {pipeline_mode = #tpu.pipeline_mode<synchronous>, transform_indices = @transform_2, window_bounds = array<i64: 1, 64>}, {pipeline_mode = #tpu.pipeline_mode<synchronous>, transform_indices = @transform_3, window_bounds = array<i64: 64, 64>}, {pipeline_mode = #tpu.pipeline_mode<synchronous>, transform_indices = @transform_4, window_bounds = array<i64: 1, 64>}, {pipeline_mode = #tpu.pipeline_mode<synchronous>, transform_indices = @transform_5, window_bounds = array<i64: 64, 128>}, {pipeline_mode = #tpu.pipeline_mode<synchronous>, transform_indices = @transform_6, window_bounds = array<i64: 1, 128>}, {transform_indices = @transform_7, window_bounds = array<i64: 16, 128>}]} {
    %c0 = arith.constant 0 : index
    %c0_0 = arith.constant 0 : index
    %0 = vector.load %arg1[%c0, %c0_0] : memref<16x32xf32, #tpu.memory_space<vmem>>, vector<16x32xf32>
    %c0_1 = arith.constant 0 : index
    %c0_2 = arith.constant 0 : index
    %1 = vector.load %arg2[%c0_1, %c0_2] : memref<32x64xf32, #tpu.memory_space<vmem>>, vector<32x64xf32>
    %c0_3 = arith.constant 0 : index
    %c0_4 = arith.constant 0 : index
    %2 = vector.load %arg3[%c0_3, %c0_4] : memref<1x64xf32, #tpu.memory_space<vmem>>, vector<1x64xf32>
    %cst = arith.constant dense<0.000000e+00> : vector<16x64xf32>
    %3 = tpu.matmul %0, %1, %cst {dimension_numbers = #tpu.dot_dimension_numbers<[1], [0], [0], [1], [0, 0, 1, 1], [], []>} : vector<16x32xf32>, vector<32x64xf32>, vector<16x64xf32> -> vector<16x64xf32>
    %4 = vector.broadcast %2 : vector<1x64xf32> to vector<16x64xf32>
    %5 = arith.addf %3, %4 : vector<16x64xf32>
    %6 = math.tanh %5 : vector<16x64xf32>
    %c0_5 = arith.constant 0 : index
    %c0_6 = arith.constant 0 : index
    %7 = vector.load %arg4[%c0_5, %c0_6] : memref<64x64xf32, #tpu.memory_space<vmem>>, vector<64x64xf32>
    %c0_7 = arith.constant 0 : index
    %c0_8 = arith.constant 0 : index
    %8 = vector.load %arg5[%c0_7, %c0_8] : memref<1x64xf32, #tpu.memory_space<vmem>>, vector<1x64xf32>
    %cst_9 = arith.constant dense<0.000000e+00> : vector<16x64xf32>
    %9 = tpu.matmul %6, %7, %cst_9 {dimension_numbers = #tpu.dot_dimension_numbers<[1], [0], [0], [1], [0, 0, 1, 1], [], []>} : vector<16x64xf32>, vector<64x64xf32>, vector<16x64xf32> -> vector<16x64xf32>
    %10 = vector.broadcast %8 : vector<1x64xf32> to vector<16x64xf32>
    %11 = arith.addf %9, %10 : vector<16x64xf32>
    %12 = math.tanh %11 : vector<16x64xf32>
    %c0_10 = arith.constant 0 : index
    %c0_11 = arith.constant 0 : index
    %13 = vector.load %arg6[%c0_10, %c0_11] : memref<64x128xf32, #tpu.memory_space<vmem>>, vector<64x128xf32>
    %c0_12 = arith.constant 0 : index
    %c0_13 = arith.constant 0 : index
    %14 = vector.load %arg7[%c0_12, %c0_13] : memref<1x128xf32, #tpu.memory_space<vmem>>, vector<1x128xf32>
    %cst_14 = arith.constant dense<0.000000e+00> : vector<16x128xf32>
    %15 = tpu.matmul %12, %13, %cst_14 {dimension_numbers = #tpu.dot_dimension_numbers<[1], [0], [0], [1], [0, 0, 1, 1], [], []>} : vector<16x64xf32>, vector<64x128xf32>, vector<16x128xf32> -> vector<16x128xf32>
    %16 = vector.broadcast %14 : vector<1x128xf32> to vector<16x128xf32>
    %17 = arith.addf %15, %16 : vector<16x128xf32>
    %c0_15 = arith.constant 0 : index
    %c0_16 = arith.constant 0 : index
    %18 = vector.load %arg8[%c0_15, %c0_16] : memref<16x128xf32, #tpu.memory_space<vmem>>, vector<16x128xf32>
    tpu.vector_store %arg8[%c0_15, %c0_16], %17 {strides = array<i32>} : memref<16x128xf32, #tpu.memory_space<vmem>>, vector<16x128xf32>,
    return
  }
  func.func @transform_0(%arg0: i32) -> (i32, i32) {
    %c0_i32 = arith.constant 0 : i32
    %c0_i32_0 = arith.constant 0 : i32
    return %arg0, %c0_i32 : i32, i32
  }
  func.func @transform_1(%arg0: i32) -> (i32, i32) {
    %c0_i32 = arith.constant 0 : i32
    %c0_i32_0 = arith.constant 0 : i32
    %c0_i32_1 = arith.constant 0 : i32
    return %c0_i32, %c0_i32_0 : i32, i32
  }
  func.func @transform_2(%arg0: i32) -> (i32, i32) {
    %c0_i32 = arith.constant 0 : i32
    %c0_i32_0 = arith.constant 0 : i32
    %c0_i32_1 = arith.constant 0 : i32
    return %c0_i32, %c0_i32_0 : i32, i32
  }
  func.func @transform_3(%arg0: i32) -> (i32, i32) {
    %c0_i32 = arith.constant 0 : i32
    %c0_i32_0 = arith.constant 0 : i32
    %c0_i32_1 = arith.constant 0 : i32
    return %c0_i32, %c0_i32_0 : i32, i32
  }
  func.func @transform_4(%arg0: i32) -> (i32, i32) {
    %c0_i32 = arith.constant 0 : i32
    %c0_i32_0 = arith.constant 0 : i32
    %c0_i32_1 = arith.constant 0 : i32
    return %c0_i32, %c0_i32_0 : i32, i32
  }
  func.func @transform_5(%arg0: i32) -> (i32, i32) {
    %c0_i32 = arith.constant 0 : i32
    %c0_i32_0 = arith.constant 0 : i32
    %c0_i32_1 = arith.constant 0 : i32
    return %c0_i32, %c0_i32_0 : i32, i32
  }
  func.func @transform_6(%arg0: i32) -> (i32, i32) {
    %c0_i32 = arith.constant 0 : i32
    %c0_i32_0 = arith.constant 0 : i32
    %c0_i32_1 = arith.constant 0 : i32
    return %c0_i32, %c0_i32_0 : i32, i32
  }
  func.func @transform_7(%arg0: i32) -> (i32, i32) {
    %c0_i32 = arith.constant 0 : i32
    %c0_i32_0 = arith.constant 0 : i32
    return %arg0, %c0_i32 : i32, i32
  }
}

</mosaic_0001>

<llo_original>
// kernel: tpu_custom_call.1
$region0: #{tpu_custom_call.1}
  #allocation0 [shape = 'u32[]', space=smem, size = 0x4, offset = 0x4, fixed_abs, tag = 'smem constant byte address 0x4 - core index']
  #allocation1 [shape = 'u32[144,128]{1,0:T(1,128)}', space=vmem, size = 0x12000, scoped, tag = 'internal scratch']
  %s0 = inlined_call_operand.hbm [shape: f32[16,32], index: 0, kind: input, shape index: {}]
  %s1 = inlined_call_operand.hbm [shape: f32[32,64], index: 1, kind: input, shape index: {}]
  %s2 = inlined_call_operand.vmem [shape: f32[1,64], index: 2, kind: input, shape index: {}]
  %s3 = inlined_call_operand.hbm [shape: f32[64,64], index: 3, kind: input, shape index: {}]
  %s4 = inlined_call_operand.vmem [shape: f32[1,64], index: 4, kind: input, shape index: {}]
  %s5 = inlined_call_operand.hbm [shape: f32[64,128], index: 5, kind: input, shape index: {}]
  %s6 = inlined_call_operand.vmem [shape: f32[1,128], index: 6, kind: input, shape index: {}]
  %s7 = inlined_call_operand.hbm [shape: f32[16,128], index: 7, kind: output, shape index: {}]
  %s8 = sld [smem:[#allocation0]]
  $region54: #{tpu_custom_call.1} parent=0
    _
  %s10 = ssub.s32 1, %s8
  %s11 = scalar_select 0, %s10, %s8
  $region1: #{tpu_custom_call.1} parent=0
    #allocation2 [shape = 'u8[8192]{0}', space=vmem, size = 0x2000, scoped, tag = 'input window, operand 0, single buffered']
    #allocation3 [shape = 's32[1]{0}', space=sflag, size = 0x4, scoped, tag = 'scoped memory for tpu_custom_call.1']
    #allocation4 [shape = 's32[1]{0}', space=sflag, size = 0x4, scoped, tag = 'scoped memory for tpu_custom_call.1']
    #allocation5 [shape = 'u8[16384]{0}', space=vmem, size = 0x4000, scoped, tag = 'input window, operand 1, single buffered']
    #allocation6 [shape = 's32[1]{0}', space=sflag, size = 0x4, scoped, tag = 'scoped memory for tpu_custom_call.1']
    #allocation7 [shape = 'u8[32768]{0}', space=vmem, size = 0x8000, scoped, tag = 'input window, operand 3, single buffered']
    #allocation8 [shape = 'u8[32768]{0}', space=vmem, size = 0x8000, scoped, tag = 'input window, operand 5, single buffered']
    #allocation9 [shape = 's32[1]{0}', space=sflag, size = 0x4, scoped, tag = 'scoped memory for tpu_custom_call.1']
    #allocation10 [shape = 'u8[8192]{0}', space=vmem, size = 0x2000, scoped, tag = 'output window, operand 0, single buffered']
    %12 = vsyncpa [#allocation3], 0
    %13 = vsyncpa [#allocation6], 0
    %14 = vsyncpa [#allocation9], 0
    %15 = vsyncpa [#allocation4], 0
    // Predicated region
    $region2: #{tpu_custom_call.1} parent=1 // pred_check
      _
    $region3: #{tpu_custom_call.1} parent=1 // pred_check_branch
      %17 = sbr.rel (0) target = $region5
    $region4: #{tpu_custom_call.1} parent=1 // pred_region
      %s19 = ssub.s32 256, 256
      %20 = vsyncadd [#allocation3], %s19
      %s21 = sshll.u32 [#allocation2], 4
      %s22 = int_to_ptr.vmem [resolvable:$true] %s21
      %27 = dma.hbm_to_vmem [thread:$0]  %s0, 256, %s22, [#allocation3], 128, 128, 8
    $region5: #{tpu_custom_call.1} parent=1 // pred_fallthru
      _
    // Predicated region
    $region6: #{tpu_custom_call.1} parent=1 // pred_check
      _
    $region7: #{tpu_custom_call.1} parent=1 // pred_check_branch
      %29 = sbr.rel (0) target = $region9
    $region8: #{tpu_custom_call.1} parent=1 // pred_region
      %s31 = ssub.s32 512, 512
      %32 = vsyncadd [#allocation6], %s31
      %s33 = sshll.u32 [#allocation5], 4
      %s34 = int_to_ptr.vmem [resolvable:$true] %s33
      %39 = dma.hbm_to_vmem [thread:$0]  %s1, 512, %s34, [#allocation6], 128, 128, 8
    $region9: #{tpu_custom_call.1} parent=1 // pred_fallthru
      _
    // Predicated region
    $region10: #{tpu_custom_call.1} parent=1 // pred_check
      _
    $region11: #{tpu_custom_call.1} parent=1 // pred_check_branch
      %41 = sbr.rel (0) target = $region13
    $region12: #{tpu_custom_call.1} parent=1 // pred_region
      _
    $region13: #{tpu_custom_call.1} parent=1 // pred_fallthru
      _
    // Predicated region
    $region14: #{tpu_custom_call.1} parent=1 // pred_check
      _
    $region15: #{tpu_custom_call.1} parent=1 // pred_check_branch
      %43 = sbr.rel (0) target = $region17
    $region16: #{tpu_custom_call.1} parent=1 // pred_region
      %s45 = ssub.s32 1024, 1024
      %46 = vsyncadd [#allocation6], %s45
      %s47 = sshll.u32 [#allocation7], 4
      %s48 = int_to_ptr.vmem [resolvable:$true] %s47
      %53 = dma.hbm_to_vmem [thread:$0]  %s3, 1024, %s48, [#allocation6], 128, 128, 8
    $region17: #{tpu_custom_call.1} parent=1 // pred_fallthru
      _
    // Predicated region
    $region18: #{tpu_custom_call.1} parent=1 // pred_check
      _
    $region19: #{tpu_custom_call.1} parent=1 // pred_check_branch
      %55 = sbr.rel (0) target = $region21
    $region20: #{tpu_custom_call.1} parent=1 // pred_region
      _
    $region21: #{tpu_custom_call.1} parent=1 // pred_fallthru
      _
    // Predicated region
    $region22: #{tpu_custom_call.1} parent=1 // pred_check
      _
    $region23: #{tpu_custom_call.1} parent=1 // pred_check_branch
      %57 = sbr.rel (0) target = $region25
    $region24: #{tpu_custom_call.1} parent=1 // pred_region
      %s59 = ssub.s32 1024, 1024
      %60 = vsyncadd [#allocation9], %s59
      %s61 = sshll.u32 [#allocation8], 4
      %s62 = int_to_ptr.vmem [resolvable:$true] %s61
      %67 = dma.hbm_to_vmem [thread:$0]  %s5, 1024, %s62, [#allocation9], 128, 128, 8
    $region25: #{tpu_custom_call.1} parent=1 // pred_fallthru
      _
    // Predicated region
    $region26: #{tpu_custom_call.1} parent=1 // pred_check
      _
    $region27: #{tpu_custom_call.1} parent=1 // pred_check_branch
      %69 = sbr.rel (0) target = $region29
    $region28: #{tpu_custom_call.1} parent=1 // pred_region
      _
    $region29: #{tpu_custom_call.1} parent=1 // pred_fallthru
      _
    // Predicated region
    $region30: #{tpu_custom_call.1} parent=1 // pred_check
      _
    $region31: #{tpu_custom_call.1} parent=1 // pred_check_branch
      %71 = sbr.rel (0) target = $region33
    $region32: #{tpu_custom_call.1} parent=1 // pred_region
      %72 = dma.done [#allocation3], 256
    $region33: #{tpu_custom_call.1} parent=1 // pred_fallthru
      _
    // Predicated region
    $region34: #{tpu_custom_call.1} parent=1 // pred_check
      _
    $region35: #{tpu_custom_call.1} parent=1 // pred_check_branch
      %74 = sbr.rel (0) target = $region37
    $region36: #{tpu_custom_call.1} parent=1 // pred_region
      %75 = dma.done [#allocation6], 512
    $region37: #{tpu_custom_call.1} parent=1 // pred_fallthru
      _
    // Predicated region
    $region38: #{tpu_custom_call.1} parent=1 // pred_check
      _
    $region39: #{tpu_custom_call.1} parent=1 // pred_check_branch
      %77 = sbr.rel (0) target = $region41
    $region40: #{tpu_custom_call.1} parent=1 // pred_region
      %78 = dma.done [#allocation6], 1024
    $region41: #{tpu_custom_call.1} parent=1 // pred_fallthru
      _
    // Predicated region
    $region42: #{tpu_custom_call.1} parent=1 // pred_check
      _
    $region43: #{tpu_custom_call.1} parent=1 // pred_check_branch
      %80 = sbr.rel (0) target = $region45
    $region44: #{tpu_custom_call.1} parent=1 // pred_region
      %81 = dma.done [#allocation9], 1024
    $region45: #{tpu_custom_call.1} parent=1 // pred_fallthru
      _
    %v82 = vld [vmem:[#allocation2] sm:$0xff]
    %v83 = vld [vmem:[#allocation2 + $0x8] sm:$0xff]
    %v84 = vld [vmem:[#allocation5] sm:$0xff]
    %v85 = vld [vmem:[#allocation5 + $0x8] sm:$0xff]
    %v86 = vld [vmem:[#allocation5 + $0x10] sm:$0xff]
    %v87 = vld [vmem:[#allocation5 + $0x18] sm:$0xff]
    %v88 = vld [vmem:[%s2] sm:$0x1]
    %v90 = vlaneseq
    %v91 = vshrl.u32 %v90, 7
    %v92 = vsub.s32 0, %v91
    %v93 = vrot.slane %v88, %v92
    %vm95 = vcmask 261120
    %v97 = vsel %vm95, %v82, 0
    %v100 = vsel %vm95, %v83, 0
    %102 = vmatprep.subr.mxu0 0.0
    %103 = vmatpush1.msra.mxu0 %v84
    %104 = vmatprep.subr.mxu0 0.0
    %105 = vmatpush1.msra.mxu0 %v85
    %106 = vmatprep.subr.mxu0 0.0
    %107 = vmatpush1.msra.mxu0 %v86
    %108 = vmatprep.subr.mxu0 0.0
    %109 = vmatpush1.msra.mxu0 %v87
    %110 = vmatprep.subr.mxu0 0.0
    %111 = vmatpush1.msra.mxu0 0.0
    %112 = vmatprep.subr.mxu0 0.0
    %113 = vmatpush1.msra.mxu0 0.0
    %114 = vmatprep.subr.mxu0 0.0
    %115 = vmatpush1.msra.mxu0 0.0
    %116 = vmatprep.subr.mxu0 0.0
    %117 = vmatpush1.msra.mxu0 0.0
    %118 = vmatprep.subr.mxu0 0.0
    %119 = vmatpush1.msra.mxu0 0.0
    %120 = vmatprep.subr.mxu0 0.0
    %121 = vmatpush1.msra.mxu0 0.0
    %122 = vmatprep.subr.mxu0 0.0
    %123 = vmatpush1.msra.mxu0 0.0
    %124 = vmatprep.subr.mxu0 0.0
    %125 = vmatpush1.msra.mxu0 0.0
    %126 = vmatprep.subr.mxu0 0.0
    %127 = vmatpush1.msra.mxu0 0.0
    %128 = vmatprep.subr.mxu0 0.0
    %129 = vmatpush1.msra.mxu0 0.0
    %130 = vmatprep.subr.mxu0 0.0
    %131 = vmatpush1.msra.mxu0 0.0
    %132 = vmatprep.subr.mxu0 0.0
    %133 = vmatpush1.msra.mxu0 0.0
    %134 = vmatprep.subr.mxu0 0.0
    %135 = vmatpush1.msra.mxu0 0.0
    %136 = vmatprep.subr.mxu0 0.0
    %137 = vmatpush1.msra.mxu0 0.0
    %138 = vmatprep.subr.mxu0 0.0
    %139 = vmatpush1.msra.mxu0 0.0
    %140 = vmatprep.subr.mxu0 0.0
    %141 = vmatpush1.msra.mxu0 0.0
    %142 = vmatprep.subr.mxu0 0.0
    %143 = vmatpush1.msra.mxu0 0.0
    %144 = vmatprep.subr.mxu0 0.0
    %145 = vmatpush1.msra.mxu0 0.0
    %146 = vmatprep.subr.mxu0 0.0
    %147 = vmatpush1.msra.mxu0 0.0
    %148 = vmatprep.subr.mxu0 0.0
    %149 = vmatpush1.msra.mxu0 0.0
    %150 = vmatprep.subr.mxu0 0.0
    %151 = vmatpush1.msra.mxu0 0.0
    %152 = vmatprep.subr.mxu0 0.0
    %153 = vmatpush1.msra.mxu0 0.0
    %154 = vmatprep.subr.mxu0 0.0
    %155 = vmatpush1.msra.mxu0 0.0
    %156 = vmatprep.subr.mxu0 0.0
    %157 = vmatpush1.msra.mxu0 0.0
    %158 = vmatprep.subr.mxu0 0.0
    %159 = vmatpush1.msra.mxu0 0.0
    %160 = vmatprep.subr.mxu0 0.0
    %161 = vmatpush1.msra.mxu0 0.0
    %162 = vmatprep.subr.mxu0 0.0
    %163 = vmatpush1.msra.mxu0 0.0
    %164 = vmatprep.subr.mxu0 0.0
    %165 = vmatpush1.msra.mxu0 0.0
    %166 = vmatprep.mubr.f32.mxu0 0.0
    %167 = vmatmul.mubr.f32.gmra.mrb[0].mxu0 %v97
    %v168 = vpop.f32.mrb[0].mxu0
    %v169 = vadd.f32 %v93, %v168
    %v170 = vpop.f32.mrb[0].mxu0
    %171 = vmatprep.mubr.f32.mxu0 0.0
    %172 = vmatmul.mubr.f32.gmra.mrb[0].mxu0 %v100
    %v173 = vpop.f32.mrb[0].mxu0
    %v174 = vadd.f32 %v93, %v173
    %v175 = vpop.f32.mrb[0].mxu0
    %176 = vdwg.mxu0
    %v177 = vtanh.pop %v169
    %v178 = vtanh.pop %v174
    %v179 = vld [vmem:[#allocation7] sm:$0xff]
    %v180 = vld [vmem:[#allocation7 + $0x8] sm:$0xff]
    %v181 = vld [vmem:[#allocation7 + $0x10] sm:$0xff]
    %v182 = vld [vmem:[#allocation7 + $0x18] sm:$0xff]
    %v183 = vld [vmem:[#allocation7 + $0x20] sm:$0xff]
    %v184 = vld [vmem:[#allocation7 + $0x28] sm:$0xff]
    %v185 = vld [vmem:[#allocation7 + $0x30] sm:$0xff]
    %v186 = vld [vmem:[#allocation7 + $0x38] sm:$0xff]
    %v187 = vld [vmem:[%s4] sm:$0x1]
    %v189 = vlaneseq
    %v190 = vshrl.u32 %v189, 7
    %v191 = vsub.s32 0, %v190
    %v192 = vrot.slane %v187, %v191
    %vm194 = vcmask 523264
    %v196 = vsel %vm194, %v177, 0
    %v199 = vsel %vm194, %v178, 0
    %201 = vmatprep.subr.mxu0 0.0
    %202 = vmatpush1.msra.mxu0 %v179
    %203 = vmatprep.subr.mxu0 0.0
    %204 = vmatpush1.msra.mxu0 %v180
    %205 = vmatprep.subr.mxu0 0.0
    %206 = vmatpush1.msra.mxu0 %v181
    %207 = vmatprep.subr.mxu0 0.0
    %208 = vmatpush1.msra.mxu0 %v182
    %209 = vmatprep.subr.mxu0 0.0
    %210 = vmatpush1.msra.mxu0 %v183
    %211 = vmatprep.subr.mxu0 0.0
    %212 = vmatpush1.msra.mxu0 %v184
    %213 = vmatprep.subr.mxu0 0.0
    %214 = vmatpush1.msra.mxu0 %v185
    %215 = vmatprep.subr.mxu0 0.0
    %216 = vmatpush1.msra.mxu0 %v186
    %217 = vmatprep.subr.mxu0 0.0
    %218 = vmatpush1.msra.mxu0 0.0
    %219 = vmatprep.subr.mxu0 0.0
    %220 = vmatpush1.msra.mxu0 0.0
    %221 = vmatprep.subr.mxu0 0.0
    %222 = vmatpush1.msra.mxu0 0.0
    %223 = vmatprep.subr.mxu0 0.0
    %224 = vmatpush1.msra.mxu0 0.0
    %225 = vmatprep.subr.mxu0 0.0
    %226 = vmatpush1.msra.mxu0 0.0
    %227 = vmatprep.subr.mxu0 0.0
    %228 = vmatpush1.msra.mxu0 0.0
    %229 = vmatprep.subr.mxu0 0.0
    %230 = vmatpush1.msra.mxu0 0.0
    %231 = vmatprep.subr.mxu0 0.0
    %232 = vmatpush1.msra.mxu0 0.0
    %233 = vmatprep.subr.mxu0 0.0
    %234 = vmatpush1.msra.mxu0 0.0
    %235 = vmatprep.subr.mxu0 0.0
    %236 = vmatpush1.msra.mxu0 0.0
    %237 = vmatprep.subr.mxu0 0.0
    %238 = vmatpush1.msra.mxu0 0.0
    %239 = vmatprep.subr.mxu0 0.0
    %240 = vmatpush1.msra.mxu0 0.0
    %241 = vmatprep.subr.mxu0 0.0
    %242 = vmatpush1.msra.mxu0 0.0
    %243 = vmatprep.subr.mxu0 0.0
    %244 = vmatpush1.msra.mxu0 0.0
    %245 = vmatprep.subr.mxu0 0.0
    %246 = vmatpush1.msra.mxu0 0.0
    %247 = vmatprep.subr.mxu0 0.0
    %248 = vmatpush1.msra.mxu0 0.0
    %249 = vmatprep.subr.mxu0 0.0
    %250 = vmatpush1.msra.mxu0 0.0
    %251 = vmatprep.subr.mxu0 0.0
    %252 = vmatpush1.msra.mxu0 0.0
    %253 = vmatprep.subr.mxu0 0.0
    %254 = vmatpush1.msra.mxu0 0.0
    %255 = vmatprep.subr.mxu0 0.0
    %256 = vmatpush1.msra.mxu0 0.0
    %257 = vmatprep.subr.mxu0 0.0
    %258 = vmatpush1.msra.mxu0 0.0
    %259 = vmatprep.subr.mxu0 0.0
    %260 = vmatpush1.msra.mxu0 0.0
    %261 = vmatprep.subr.mxu0 0.0
    %262 = vmatpush1.msra.mxu0 0.0
    %263 = vmatprep.subr.mxu0 0.0
    %264 = vmatpush1.msra.mxu0 0.0
    %265 = vmatprep.mubr.f32.mxu0 0.0
    %266 = vmatmul.mubr.f32.gmra.mrb[0].mxu0 %v196
    %v267 = vpop.f32.mrb[0].mxu0
    %v268 = vadd.f32 %v192, %v267
    %v269 = vpop.f32.mrb[0].mxu0
    %270 = vmatprep.mubr.f32.mxu0 0.0
    %271 = vmatmul.mubr.f32.gmra.mrb[0].mxu0 %v199
    %v272 = vpop.f32.mrb[0].mxu0
    %v273 = vadd.f32 %v192, %v272
    %v274 = vpop.f32.mrb[0].mxu0
    %275 = vdwg.mxu0
    %v276 = vtanh.pop %v268
    %v277 = vtanh.pop %v273
    %v278 = vld [vmem:[#allocation8] sm:$0xff]
    %v279 = vld [vmem:[#allocation8 + $0x8] sm:$0xff]
    %v280 = vld [vmem:[#allocation8 + $0x10] sm:$0xff]
    %v281 = vld [vmem:[#allocation8 + $0x18] sm:$0xff]
    %v282 = vld [vmem:[#allocation8 + $0x20] sm:$0xff]
    %v283 = vld [vmem:[#allocation8 + $0x28] sm:$0xff]
    %v284 = vld [vmem:[#allocation8 + $0x30] sm:$0xff]
    %v285 = vld [vmem:[#allocation8 + $0x38] sm:$0xff]
    %v286 = vld [vmem:[%s6] sm:$0x1]
    %v288 = vlaneseq
    %v289 = vshrl.u32 %v288, 7
    %v290 = vsub.s32 0, %v289
    %v291 = vrot.slane %v286, %v290
    %v294 = vsel %vm194, %v276, 0
    %v297 = vsel %vm194, %v277, 0
    %299 = vmatprep.subr.mxu0 0.0
    %300 = vmatpush1.msra.mxu0 %v278
    %301 = vmatprep.subr.mxu0 0.0
    %302 = vmatpush1.msra.mxu0 %v279
    %303 = vmatprep.subr.mxu0 0.0
    %304 = vmatpush1.msra.mxu0 %v280
    %305 = vmatprep.subr.mxu0 0.0
    %306 = vmatpush1.msra.mxu0 %v281
    %307 = vmatprep.subr.mxu0 0.0
    %308 = vmatpush1.msra.mxu0 %v282
    %309 = vmatprep.subr.mxu0 0.0
    %310 = vmatpush1.msra.mxu0 %v283
    %311 = vmatprep.subr.mxu0 0.0
    %312 = vmatpush1.msra.mxu0 %v284
    %313 = vmatprep.subr.mxu0 0.0
    %314 = vmatpush1.msra.mxu0 %v285
    %315 = vmatprep.subr.mxu0 0.0
    %316 = vmatpush1.msra.mxu0 0.0
    %317 = vmatprep.subr.mxu0 0.0
    %318 = vmatpush1.msra.mxu0 0.0
    %319 = vmatprep.subr.mxu0 0.0
    %320 = vmatpush1.msra.mxu0 0.0
    %321 = vmatprep.subr.mxu0 0.0
    %322 = vmatpush1.msra.mxu0 0.0
    %323 = vmatprep.subr.mxu0 0.0
    %324 = vmatpush1.msra.mxu0 0.0
    %325 = vmatprep.subr.mxu0 0.0
    %326 = vmatpush1.msra.mxu0 0.0
    %327 = vmatprep.subr.mxu0 0.0
    %328 = vmatpush1.msra.mxu0 0.0
    %329 = vmatprep.subr.mxu0 0.0
    %330 = vmatpush1.msra.mxu0 0.0
    %331 = vmatprep.subr.mxu0 0.0
    %332 = vmatpush1.msra.mxu0 0.0
    %333 = vmatprep.subr.mxu0 0.0
    %334 = vmatpush1.msra.mxu0 0.0
    %335 = vmatprep.subr.mxu0 0.0
    %336 = vmatpush1.msra.mxu0 0.0
    %337 = vmatprep.subr.mxu0 0.0
    %338 = vmatpush1.msra.mxu0 0.0
    %339 = vmatprep.subr.mxu0 0.0
    %340 = vmatpush1.msra.mxu0 0.0
    %341 = vmatprep.subr.mxu0 0.0
    %342 = vmatpush1.msra.mxu0 0.0
    %343 = vmatprep.subr.mxu0 0.0
    %344 = vmatpush1.msra.mxu0 0.0
    %345 = vmatprep.subr.mxu0 0.0
    %346 = vmatpush1.msra.mxu0 0.0
    %347 = vmatprep.subr.mxu0 0.0
    %348 = vmatpush1.msra.mxu0 0.0
    %349 = vmatprep.subr.mxu0 0.0
    %350 = vmatpush1.msra.mxu0 0.0
    %351 = vmatprep.subr.mxu0 0.0
    %352 = vmatpush1.msra.mxu0 0.0
    %353 = vmatprep.subr.mxu0 0.0
    %354 = vmatpush1.msra.mxu0 0.0
    %355 = vmatprep.subr.mxu0 0.0
    %356 = vmatpush1.msra.mxu0 0.0
    %357 = vmatprep.subr.mxu0 0.0
    %358 = vmatpush1.msra.mxu0 0.0
    %359 = vmatprep.subr.mxu0 0.0
    %360 = vmatpush1.msra.mxu0 0.0
    %361 = vmatprep.subr.mxu0 0.0
    %362 = vmatpush1.msra.mxu0 0.0
    %363 = vmatprep.mubr.f32.mxu0 0.0
    %364 = vmatmul.mubr.f32.gmra.mrb[0].mxu0 %v294
    %v365 = vpop.f32.mrb[0].mxu0
    %v366 = vadd.f32 %v291, %v365
    %v367 = vpop.f32.mrb[0].mxu0
    %368 = vmatprep.mubr.f32.mxu0 0.0
    %369 = vmatmul.mubr.f32.gmra.mrb[0].mxu0 %v297
    %v370 = vpop.f32.mrb[0].mxu0
    %v371 = vadd.f32 %v291, %v370
    %v372 = vpop.f32.mrb[0].mxu0
    %373 = vdwg.mxu0
    %374 = vst [vmem:[#allocation10] sm:$0xff] %v366
    %375 = vst [vmem:[#allocation10 + $0x8] sm:$0xff] %v371
    // Predicated region
    $region46: #{tpu_custom_call.1} parent=1 // pred_check
      _
    $region47: #{tpu_custom_call.1} parent=1 // pred_check_branch
      %377 = sbr.rel (0) target = $region49
    $region48: #{tpu_custom_call.1} parent=1 // pred_region
      %s379 = ssub.s32 256, 256
      %380 = vsyncadd [#allocation4], %s379
      %s381 = sshll.u32 [#allocation10], 4
      %s382 = int_to_ptr.vmem [resolvable:$true] %s381
      %387 = dma.vmem_to_hbm [thread:$0]  %s382, 256, %s7, [#allocation4], 128, 128, 8
    $region49: #{tpu_custom_call.1} parent=1 // pred_fallthru
      _
    // Predicated region
    $region50: #{tpu_custom_call.1} parent=1 // pred_check
      _
    $region51: #{tpu_custom_call.1} parent=1 // pred_check_branch
      %389 = sbr.rel (0) target = $region53
    $region52: #{tpu_custom_call.1} parent=1 // pred_region
      %390 = dma.done [#allocation4], 256
    $region53: #{tpu_custom_call.1} parent=1 // pred_fallthru
      _
    %391 = vsyncpa [#allocation3], 1
    %392 = vsyncpa [#allocation6], 1
    %393 = vsyncpa [#allocation9], 1
    %394 = vsyncpa [#allocation4], 1

</llo_original>
